<compile_context>
chip_gen: v6e
topology: v6e:2x2x1
jax: 0.10.0
libtpu: 0.0.40
codegen_flags: <defaults>
</compile_context>

<pallas_src>
import jax
import jax.numpy as jnp
from jax import lax
from jax.experimental import pallas as pl
from jax.experimental.pallas import tpu as pltpu

_LANE = 128
_SUBLANE = 8

# VMEM budget for the per-step tile working set (double-buffered x tile,
# (tm, H) activation + temporaries, double-buffered output block).
_TILE_VMEM_BUDGET = 24 * 1024 * 1024
# Scoped-VMEM limit handed to Mosaic: above v5e/v6e defaults (16/32 MiB) so the
# large tile is accepted, below v7x's 64 MiB physical VMEM.
_VMEM_LIMIT_BYTES = 40 * 1024 * 1024
_TM_MAX = 16384
_TM_MIN = 256
# Below this many rows: single block (fixed per-grid-step cost dominates).
# Above it: always >= 2 tiles so v7x's two TensorCores both get work.
_SINGLE_BLOCK_MAX_ROWS = 2048


def _round_up(x, m):
    return (x + m - 1) // m * m


def _mlp_kernel_lane_dense(x_ref, w1_ref, b1_ref, w2t_ref, b2_ref, o_ref):
    # x_ref   : (tm, D_in)   node-row tile
    # w1_ref  : (D_in, H)    layer-1 weight (torch W1^T)
    # b1_ref  : (1, H)
    # w2t_ref : (D_out, H)   layer-2 weight in torch layout (D_out < 128)
    # b2_ref  : (D_out, 1)
    # o_ref   : (D_out, tm)  lane-dense output block
    h = jnp.dot(x_ref[...], w1_ref[...], preferred_element_type=jnp.float32)
    h = jnp.maximum(h + b1_ref[...], 0.0)            # ReLU on the VPU (f32)
    # (D_out, H) contracted with (tm, H) over H -> (D_out, tm): the per-node
    # outputs land directly on the lane axis (unmasked lane-dense vst, dense
    # HBM writeback) instead of a (tm, D_out) block with <128 live lanes.
    o = lax.dot_general(
        w2t_ref[...], h,
        dimension_numbers=(((1,), (1,)), ((), ())),
        preferred_element_type=jnp.float32)
    o_ref[...] = (o + b2_ref[...]).astype(o_ref.dtype)


def _mlp_kernel_rowmajor(x_ref, w1_ref, b1_ref, w2_ref, b2_ref, o_ref):
    # Used only when D_out >= 128 (output is already lane-dense row-major).
    # x_ref  : (tm, D_in); w1_ref: (D_in, H); b1_ref: (1, H)
    # w2_ref : (H, D_out); b2_ref: (1, D_out); o_ref: (tm, D_out)
    h = jnp.dot(x_ref[...], w1_ref[...], preferred_element_type=jnp.float32)
    h = jnp.maximum(h + b1_ref[...], 0.0)
    o = jnp.dot(h, w2_ref[...], preferred_element_type=jnp.float32)
    o_ref[...] = (o + b2_ref[...]).astype(o_ref.dtype)


def _choose_tm(M, d_in, h, out_row_bytes):
    """VMEM-derived row tile (f32, lane-padded accounting)."""
    if M <= _SINGLE_BLOCK_MAX_ROWS:
        return M                                   # single block, exact dims
    per_row = (2 * _round_up(d_in, _LANE) * 4      # x tile, double-buffered
               + 3 * _round_up(h, _LANE) * 4       # h + temps (+ possible
                                                   #   transpose materialized
                                                   #   by the dot_general)
               + out_row_bytes)                    # output, double-buffered
    tm = int(_TILE_VMEM_BUDGET // per_row) // _LANE * _LANE
    tm = max(_TM_MIN, min(tm, _TM_MAX))
    # Guarantee >= 2 tiles so the "parallel" grid axis can be sharded across
    # v7x's two TensorCores (no effect on 1-TC v5e/v6e).
    tm = min(tm, _round_up(-(-M // 2), _LANE))
    return tm


@jax.jit
def graph_classification_forward(nodes, w1, b1, w2, b2):
    """nodes: (B, N, D_in); w1: (D_in, H) (= torch W1^T); b1: (H,);
    w2: (H, D_out) (= torch W2^T); b2: (D_out,).
    Returns (B, N, D_out), or (B, N) when D_out == 1 (matches torch .squeeze(2))."""
    B, N, D_in = nodes.shape
    H = w1.shape[1]
    D_out = w2.shape[1]
    M = B * N
    lane_dense = D_out < _LANE

    if lane_dense:
        out_row_bytes = 2 * _round_up(D_out, _SUBLANE) * 4   # (D_out, tm) block
    else:
        out_row_bytes = 2 * _round_up(D_out, _LANE) * 4      # (tm, D_out) block

    tm = _choose_tm(M, D_in, H, out_row_bytes)
    num_tiles = -(-M // tm)

    # No jnp.pad over x: the ragged tail block reads garbage rows that only
    # feed masked (discarded) output lanes/rows.
    x2d = nodes.reshape(M, D_in)
    b1_2d = b1.reshape(1, H)

    itemsize = jnp.dtype(nodes.dtype).itemsize
    cost = pl.CostEstimate(
        flops=2 * M * (D_in * H + H * D_out),
        transcendentals=0,
        bytes_accessed=(M * D_in + M * D_out) * itemsize
        + (D_in * H + H + H * D_out + D_out) * 4)

    common_in_specs = [
        pl.BlockSpec((tm, D_in), lambda i: (i, 0)),   # node-row tile
        pl.BlockSpec((D_in, H), lambda i: (0, 0)),    # W1 (grid-invariant)
        pl.BlockSpec((1, H), lambda i: (0, 0)),       # b1
    ]
    compiler_params = pltpu.CompilerParams(
        dimension_semantics=("parallel",),
        vmem_limit_bytes=_VMEM_LIMIT_BYTES)

    if lane_dense:
        # Lane-dense (D_out, M) output slab; each grid step writes a
        # (D_out, tm) lane block with unmasked, contiguous stores.
        w2t = w2.T                        # (D_out, H) == torch W2 layout
        b2_2d = b2.reshape(D_out, 1)
        out2d = pl.pallas_call(
            _mlp_kernel_lane_dense,
            out_shape=jax.ShapeDtypeStruct((D_out, M), nodes.dtype),
            grid_spec=pltpu.PrefetchScalarGridSpec(
                num_scalar_prefetch=0,
                grid=(num_tiles,),
                in_specs=common_in_specs + [
                    pl.BlockSpec((D_out, H), lambda i: (0, 0)),   # W2 (torch)
                    pl.BlockSpec((D_out, 1), lambda i: (0, 0)),   # b2
                ],
                out_specs=pl.BlockSpec((D_out, tm), lambda i: (0, i)),
            ),
            compiler_params=compiler_params,
            cost_estimate=cost,
        )(x2d, w1, b1_2d, w2t, b2_2d)
        if D_out == 1:
            return out2d.reshape(B, N)        # matches torch .squeeze(2)
        return out2d.T.reshape(B, N, D_out)   # tiny wrapper-side transpose

    # D_out >= 128: row-major output is already lane-dense.
    b2_2d = b2.reshape(1, D_out)
    out2d = pl.pallas_call(
        _mlp_kernel_rowmajor,
        out_shape=jax.ShapeDtypeStruct((M, D_out), nodes.dtype),
        grid_spec=pltpu.PrefetchScalarGridSpec(
            num_scalar_prefetch=0,
            grid=(num_tiles,),
            in_specs=common_in_specs + [
                pl.BlockSpec((H, D_out), lambda i: (0, 0)),   # W2
                pl.BlockSpec((1, D_out), lambda i: (0, 0)),   # b2
            ],
            out_specs=pl.BlockSpec((tm, D_out), lambda i: (i, 0)),
        ),
        compiler_params=compiler_params,
        cost_estimate=cost,
    )(x2d, w1, b1_2d, w2, b2_2d)
    return out2d.reshape(B, N, D_out)


def init_linear_params(key, in_features, out_features, dtype=jnp.float32):
    """PyTorch-Linear-style init: U(-1/sqrt(fan_in), 1/sqrt(fan_in)).

    Returned weight is (in_features, out_features) == torch W^T, so the kernel
    computes x @ W_t which equals torch's x @ W.T.
    """
    kw, kb = jax.random.split(key)
    bound = 1.0 / jnp.sqrt(in_features)
    w = jax.random.uniform(kw, (in_features, out_features), dtype,
                           minval=-bound, maxval=bound)
    b = jax.random.uniform(kb, (out_features,), dtype,
                           minval=-bound, maxval=bound)
    return w, b


def _reference(nodes, w1, b1, w2, b2):
    B, N, D_in = nodes.shape
    D_out = w2.shape[1]
    h = jnp.maximum(nodes.reshape(B * N, D_in) @ w1 + b1, 0.0)
    o = (h @ w2 + b2).reshape(B, N, D_out)
    return jnp.squeeze(o, axis=2) if D_out == 1 else o


if __name__ == "__main__":
    key = jax.random.PRNGKey(0)
    D_in, H = 32, 32

    k_nodes, k_l1, k_l2, key = jax.random.split(key, 4)
    w1, b1 = init_linear_params(k_l1, D_in, H)
    w2, b2 = init_linear_params(k_l2, H, 1)

    # Case 1: module's typical use (out_dim == 1 -> squeeze), tiny problem ->
    # single-block grid, lane-dense (1, M) output.
    nodes = jax.random.normal(k_nodes, (2, 16, D_in), jnp.float32)
    out = jax.block_until_ready(
        graph_classification_forward(nodes, w1, b1, w2, b2))
    ref = _reference(nodes, w1, b1, w2, b2)
    assert out.shape == (2, 16)
    assert jnp.allclose(out, ref, atol=1e-5, rtol=1e-5)

    # Case 2: out_dim == 1 with M=2400 > 2048 -> >= 2 row tiles, ragged tail
    # block handled by masked stores (no jnp.pad).
    k_nodes2, key = jax.random.split(key)
    nodes2 = jax.random.normal(k_nodes2, (2, 1200, D_in), jnp.float32)
    out2 = jax.block_until_ready(
        graph_classification_forward(nodes2, w1, b1, w2, b2))
    ref2 = _reference(nodes2, w1, b1, w2, b2)
    assert out2.shape == (2, 1200)
    assert jnp.allclose(out2, ref2, atol=1e-5, rtol=1e-5)

    # Case 3: 1 < out_dim < 128 -> lane-dense (D_out, M) slab, odd row count.
    D_out3 = 4
    k_nodes3, k_l23, key = jax.random.split(key, 3)
    nodes3 = jax.random.normal(k_nodes3, (2, 13, D_in), jnp.float32)  # M = 26
    w2b, b2b = init_linear_params(k_l23, H, D_out3)
    out3 = jax.block_until_ready(
        graph_classification_forward(nodes3, w1, b1, w2b, b2b))
    ref3 = _reference(nodes3, w1, b1, w2b, b2b)
    assert out3.shape == (2, 13, D_out3)
    assert jnp.allclose(out3, ref3, atol=1e-5, rtol=1e-5)

    # Case 4: out_dim >= 128 -> row-major path.
    D_out4 = 128
    k_nodes4, k_l24, key = jax.random.split(key, 3)
    nodes4 = jax.random.normal(k_nodes4, (2, 8, D_in), jnp.float32)
    w2c, b2c = init_linear_params(k_l24, H, D_out4)
    out4 = jax.block_until_ready(
        graph_classification_forward(nodes4, w1, b1, w2c, b2c))
    ref4 = _reference(nodes4, w1, b1, w2c, b2c)
    assert out4.shape == (2, 8, D_out4)
    assert jnp.allclose(out4, ref4, atol=1e-5, rtol=1e-5)

    print("KERNEL_OK")
</pallas_src>

<mosaic_0001>
module attributes {stable_mosaic.version = 11 : i64} {
  func.func @_mlp_kernel_lane_dense(%arg0: i32, %arg1: memref<32x32xf32, #tpu.memory_space<vmem>>, %arg2: memref<32x32xf32, #tpu.memory_space<vmem>>, %arg3: memref<1x32xf32, #tpu.memory_space<vmem>>, %arg4: memref<1x32xf32, #tpu.memory_space<vmem>>, %arg5: memref<1x1xf32, #tpu.memory_space<vmem>>, %arg6: memref<1x32xf32, #tpu.memory_space<vmem>>) attributes {dimension_semantics = [#tpu.dimension_semantics<parallel>], iteration_bounds = array<i64: 1>, scalar_prefetch = 0 : i64, scratch_operands = 0 : i64, tpu.core_type = #tpu.core_type<tc>, window_params = [{transform_indices = @transform_0, window_bounds = array<i64: 32, 32>}, {pipeline_mode = #tpu.pipeline_mode<synchronous>, transform_indices = @transform_1, window_bounds = array<i64: 32, 32>}, {pipeline_mode = #tpu.pipeline_mode<synchronous>, transform_indices = @transform_2, window_bounds = array<i64: 1, 32>}, {pipeline_mode = #tpu.pipeline_mode<synchronous>, transform_indices = @transform_3, window_bounds = array<i64: 1, 32>}, {pipeline_mode = #tpu.pipeline_mode<synchronous>, transform_indices = @transform_4, window_bounds = array<i64: 1, 1>}, {transform_indices = @transform_5, window_bounds = array<i64: 1, 32>}]} {
    %c0 = arith.constant 0 : index
    %c0_0 = arith.constant 0 : index
    %0 = vector.load %arg1[%c0, %c0_0] : memref<32x32xf32, #tpu.memory_space<vmem>>, vector<32x32xf32>
    %c0_1 = arith.constant 0 : index
    %c0_2 = arith.constant 0 : index
    %1 = vector.load %arg2[%c0_1, %c0_2] : memref<32x32xf32, #tpu.memory_space<vmem>>, vector<32x32xf32>
    %cst = arith.constant dense<0.000000e+00> : vector<32x32xf32>
    %2 = tpu.matmul %0, %1, %cst {dimension_numbers = #tpu.dot_dimension_numbers<[1], [0], [0], [1], [0, 0, 1, 1], [], []>} : vector<32x32xf32>, vector<32x32xf32>, vector<32x32xf32> -> vector<32x32xf32>
    %c0_3 = arith.constant 0 : index
    %c0_4 = arith.constant 0 : index
    %3 = vector.load %arg3[%c0_3, %c0_4] : memref<1x32xf32, #tpu.memory_space<vmem>>, vector<1x32xf32>
    %4 = vector.broadcast %3 : vector<1x32xf32> to vector<32x32xf32>
    %5 = arith.addf %2, %4 : vector<32x32xf32>
    %cst_5 = arith.constant 0.000000e+00 : f32
    %6 = vector.broadcast %cst_5 : f32 to vector<32x32xf32>
    %7 = arith.maximumf %5, %6 : vector<32x32xf32>
    %c0_6 = arith.constant 0 : index
    %c0_7 = arith.constant 0 : index
    %8 = vector.load %arg4[%c0_6, %c0_7] : memref<1x32xf32, #tpu.memory_space<vmem>>, vector<1x32xf32>
    %cst_8 = arith.constant dense<0.000000e+00> : vector<1x32xf32>
    %9 = tpu.matmul %8, %7, %cst_8 {dimension_numbers = #tpu.dot_dimension_numbers<[1], [1], [0], [0], [0, 0, 1, 0], [], []>} : vector<1x32xf32>, vector<32x32xf32>, vector<1x32xf32> -> vector<1x32xf32>
    %c0_9 = arith.constant 0 : index
    %c0_10 = arith.constant 0 : index
    %10 = vector.load %arg5[%c0_9, %c0_10] : memref<1x1xf32, #tpu.memory_space<vmem>>, vector<1x1xf32>
    %11 = vector.broadcast %10 : vector<1x1xf32> to vector<1x32xf32>
    %12 = arith.addf %9, %11 : vector<1x32xf32>
    %c0_11 = arith.constant 0 : index
    %c0_12 = arith.constant 0 : index
    %13 = vector.load %arg6[%c0_11, %c0_12] : memref<1x32xf32, #tpu.memory_space<vmem>>, vector<1x32xf32>
    tpu.vector_store %arg6[%c0_11, %c0_12], %12 {strides = array<i32>} : memref<1x32xf32, #tpu.memory_space<vmem>>, vector<1x32xf32>,
    return
  }
  func.func @transform_0(%arg0: i32) -> (i32, i32) {
    %c0_i32 = arith.constant 0 : i32
    %c0_i32_0 = arith.constant 0 : i32
    return %arg0, %c0_i32 : i32, i32
  }
  func.func @transform_1(%arg0: i32) -> (i32, i32) {
    %c0_i32 = arith.constant 0 : i32
    %c0_i32_0 = arith.constant 0 : i32
    %c0_i32_1 = arith.constant 0 : i32
    return %c0_i32, %c0_i32_0 : i32, i32
  }
  func.func @transform_2(%arg0: i32) -> (i32, i32) {
    %c0_i32 = arith.constant 0 : i32
    %c0_i32_0 = arith.constant 0 : i32
    %c0_i32_1 = arith.constant 0 : i32
    return %c0_i32, %c0_i32_0 : i32, i32
  }
  func.func @transform_3(%arg0: i32) -> (i32, i32) {
    %c0_i32 = arith.constant 0 : i32
    %c0_i32_0 = arith.constant 0 : i32
    %c0_i32_1 = arith.constant 0 : i32
    return %c0_i32, %c0_i32_0 : i32, i32
  }
  func.func @transform_4(%arg0: i32) -> (i32, i32) {
    %c0_i32 = arith.constant 0 : i32
    %c0_i32_0 = arith.constant 0 : i32
    %c0_i32_1 = arith.constant 0 : i32
    return %c0_i32, %c0_i32_0 : i32, i32
  }
  func.func @transform_5(%arg0: i32) -> (i32, i32) {
    %c0_i32 = arith.constant 0 : i32
    %c0_i32_0 = arith.constant 0 : i32
    return %c0_i32, %arg0 : i32, i32
  }
}

</mosaic_0001>

<llo_original>
// kernel: graph_classification_forward.1
$region0: #{graph_classification_forward.1}
  #allocation0 [shape = 'u32[]', space=smem, size = 0x4, offset = 0x4, fixed_abs, tag = 'smem constant byte address 0x4 - core index']
  #allocation1 [shape = 'u32[144,128]{1,0:T(1,128)}', space=vmem, size = 0x12000, scoped, tag = 'internal scratch']
  #allocation2 [shape = 'f32[1,1]{1,0:T(1,128)S(1)}', space=vmem, size = 0x200, scoped, tag = 'scoped memory for graph_classification_forward.1']
  %s0 = inlined_call_operand.hbm [shape: f32[32,32], index: 0, kind: input, shape index: {}]
  %s1 = inlined_call_operand.hbm [shape: f32[32,32], index: 1, kind: input, shape index: {}]
  %s2 = inlined_call_operand.vmem [shape: f32[1,32], index: 2, kind: input, shape index: {}]
  %s3 = inlined_call_operand.vmem [shape: f32[1,32], index: 3, kind: input, shape index: {}]
  %s4 = inlined_call_operand.<no memory space> [shape: f32[1,1], index: 4, kind: input, shape index: {}]
  %s5 = inlined_call_operand.vmem [shape: f32[1,32], index: 5, kind: output, shape index: {}]
  %s6 = sld [smem:[#allocation0]]
  $region38: #{graph_classification_forward.1} parent=0
    _
  %s8 = ssub.s32 1, %s6
  %s9 = scalar_select 0, %s8, %s6
  %v10 = vstv %s4
  %11 = vst [vmem:[#allocation2] sm:$0x1] %v10
  $region1: #{graph_classification_forward.1} parent=0
    #allocation3 [shape = 'u8[16384]{0}', space=vmem, size = 0x4000, scoped, tag = 'input window, operand 0, single buffered']
    #allocation4 [shape = 's32[1]{0}', space=sflag, size = 0x4, scoped, tag = 'scoped memory for graph_classification_forward.1']
    #allocation5 [shape = 'u8[16384]{0}', space=vmem, size = 0x4000, scoped, tag = 'input window, operand 1, single buffered']
    #allocation6 [shape = 's32[1]{0}', space=sflag, size = 0x4, scoped, tag = 'scoped memory for graph_classification_forward.1']
    %12 = vsyncpa [#allocation4], 0
    %13 = vsyncpa [#allocation6], 0
    // Predicated region
    $region2: #{graph_classification_forward.1} parent=1 // pred_check
      _
    $region3: #{graph_classification_forward.1} parent=1 // pred_check_branch
      %15 = sbr.rel (0) target = $region5
    $region4: #{graph_classification_forward.1} parent=1 // pred_region
      %s17 = ssub.s32 512, 512
      %18 = vsyncadd [#allocation4], %s17
      %s19 = sshll.u32 [#allocation3], 4
      %s20 = int_to_ptr.vmem [resolvable:$true] %s19
      %25 = dma.hbm_to_vmem [thread:$0]  %s0, 512, %s20, [#allocation4], 128, 128, 8
    $region5: #{graph_classification_forward.1} parent=1 // pred_fallthru
      _
    // Predicated region
    $region6: #{graph_classification_forward.1} parent=1 // pred_check
      _
    $region7: #{graph_classification_forward.1} parent=1 // pred_check_branch
      %27 = sbr.rel (0) target = $region9
    $region8: #{graph_classification_forward.1} parent=1 // pred_region
      %s29 = ssub.s32 512, 512
      %30 = vsyncadd [#allocation6], %s29
      %s31 = sshll.u32 [#allocation5], 4
      %s32 = int_to_ptr.vmem [resolvable:$true] %s31
      %37 = dma.hbm_to_vmem [thread:$0]  %s1, 512, %s32, [#allocation6], 128, 128, 8
    $region9: #{graph_classification_forward.1} parent=1 // pred_fallthru
      _
    // Predicated region
    $region10: #{graph_classification_forward.1} parent=1 // pred_check
      _
    $region11: #{graph_classification_forward.1} parent=1 // pred_check_branch
      %39 = sbr.rel (0) target = $region13
    $region12: #{graph_classification_forward.1} parent=1 // pred_region
      _
    $region13: #{graph_classification_forward.1} parent=1 // pred_fallthru
      _
    // Predicated region
    $region14: #{graph_classification_forward.1} parent=1 // pred_check
      _
    $region15: #{graph_classification_forward.1} parent=1 // pred_check_branch
      %41 = sbr.rel (0) target = $region17
    $region16: #{graph_classification_forward.1} parent=1 // pred_region
      _
    $region17: #{graph_classification_forward.1} parent=1 // pred_fallthru
      _
    // Predicated region
    $region18: #{graph_classification_forward.1} parent=1 // pred_check
      _
    $region19: #{graph_classification_forward.1} parent=1 // pred_check_branch
      %43 = sbr.rel (0) target = $region21
    $region20: #{graph_classification_forward.1} parent=1 // pred_region
      _
    $region21: #{graph_classification_forward.1} parent=1 // pred_fallthru
      _
    // Predicated region
    $region22: #{graph_classification_forward.1} parent=1 // pred_check
      _
    $region23: #{graph_classification_forward.1} parent=1 // pred_check_branch
      %45 = sbr.rel (0) target = $region25
    $region24: #{graph_classification_forward.1} parent=1 // pred_region
      %46 = dma.done [#allocation4], 512
    $region25: #{graph_classification_forward.1} parent=1 // pred_fallthru
      _
    // Predicated region
    $region26: #{graph_classification_forward.1} parent=1 // pred_check
      _
    $region27: #{graph_classification_forward.1} parent=1 // pred_check_branch
      %48 = sbr.rel (0) target = $region29
    $region28: #{graph_classification_forward.1} parent=1 // pred_region
      %49 = dma.done [#allocation6], 512
    $region29: #{graph_classification_forward.1} parent=1 // pred_fallthru
      _
    %v50 = vld [vmem:[#allocation3] sm:$0xff]
    %v51 = vld [vmem:[#allocation3 + $0x8] sm:$0xff]
    %v52 = vld [vmem:[#allocation3 + $0x10] sm:$0xff]
    %v53 = vld [vmem:[#allocation3 + $0x18] sm:$0xff]
    %v54 = vld [vmem:[#allocation5] sm:$0xff]
    %v55 = vld [vmem:[#allocation5 + $0x8] sm:$0xff]
    %v56 = vld [vmem:[#allocation5 + $0x10] sm:$0xff]
    %v57 = vld [vmem:[#allocation5 + $0x18] sm:$0xff]
    %v58 = vld [vmem:[%s2] sm:$0x1]
    %v60 = vlaneseq
    %v61 = vshrl.u32 %v60, 7
    %v62 = vsub.s32 0, %v61
    %v63 = vrot.slane %v58, %v62
    %vm65 = vcmask 261120
    %v67 = vsel %vm65, %v50, 0
    %v70 = vsel %vm65, %v51, 0
    %v73 = vsel %vm65, %v52, 0
    %v76 = vsel %vm65, %v53, 0
    %78 = vmatprep.subr.mxu0 0.0
    %79 = vmatpush1.msra.mxu0 0.0
    %80 = vmatprep.subr.mxu0 0.0
    %81 = vmatpush1.msra.mxu0 0.0
    %82 = vmatprep.subr.mxu0 0.0
    %83 = vmatpush1.msra.mxu0 0.0
    %84 = vmatprep.subr.mxu0 0.0
    %85 = vmatpush1.msra.mxu0 0.0
    %86 = vmatprep.subr.mxu0 0.0
    %87 = vmatpush1.msra.mxu0 0.0
    %88 = vmatprep.subr.mxu0 0.0
    %89 = vmatpush1.msra.mxu0 0.0
    %90 = vmatprep.subr.mxu0 0.0
    %91 = vmatpush1.msra.mxu0 0.0
    %92 = vmatprep.subr.mxu0 0.0
    %93 = vmatpush1.msra.mxu0 0.0
    %94 = vmatprep.subr.mxu0 0.0
    %95 = vmatpush1.msra.mxu0 0.0
    %96 = vmatprep.subr.mxu0 0.0
    %97 = vmatpush1.msra.mxu0 0.0
    %98 = vmatprep.subr.mxu0 0.0
    %99 = vmatpush1.msra.mxu0 0.0
    %100 = vmatprep.subr.mxu0 0.0
    %101 = vmatpush1.msra.mxu0 0.0
    %102 = vmatprep.subr.mxu0 0.0
    %103 = vmatpush1.msra.mxu0 %v57
    %104 = vmatprep.subr.mxu0 0.0
    %105 = vmatpush1.msra.mxu0 %v56
    %106 = vmatprep.subr.mxu0 0.0
    %107 = vmatpush1.msra.mxu0 %v55
    %108 = vmatprep.subr.mxu0 0.0
    %109 = vmatpush1.msra.mxu0 %v54
    %110 = vmatprep.subr.mxu0 0.0
    %111 = vmatpush2.msra.mxu0 0.0
    %112 = vmatprep.subr.mxu0 0.0
    %113 = vmatpush2.msra.mxu0 0.0
    %114 = vmatprep.subr.mxu0 0.0
    %115 = vmatpush2.msra.mxu0 0.0
    %116 = vmatprep.subr.mxu0 0.0
    %117 = vmatpush2.msra.mxu0 0.0
    %118 = vmatprep.subr.mxu0 0.0
    %119 = vmatpush2.msra.mxu0 0.0
    %120 = vmatprep.subr.mxu0 0.0
    %121 = vmatpush2.msra.mxu0 0.0
    %122 = vmatprep.subr.mxu0 0.0
    %123 = vmatpush2.msra.mxu0 0.0
    %124 = vmatprep.subr.mxu0 0.0
    %125 = vmatpush2.msra.mxu0 0.0
    %126 = vmatprep.subr.mxu0 0.0
    %127 = vmatpush2.msra.mxu0 0.0
    %128 = vmatprep.subr.mxu0 0.0
    %129 = vmatpush2.msra.mxu0 0.0
    %130 = vmatprep.subr.mxu0 0.0
    %131 = vmatpush2.msra.mxu0 0.0
    %132 = vmatprep.subr.mxu0 0.0
    %133 = vmatpush2.msra.mxu0 0.0
    %134 = vmatprep.subr.mxu0 0.0
    %135 = vmatpush2.msra.mxu0 0.0
    %136 = vmatprep.subr.mxu0 0.0
    %137 = vmatpush2.msra.mxu0 0.0
    %138 = vmatprep.subr.mxu0 0.0
    %139 = vmatpush2.msra.mxu0 0.0
    %140 = vmatprep.subr.mxu0 0.0
    %141 = vmatpush2.msra.mxu0 0.0
    %142 = vmatprep.mubr.f32.mxu0 0.0
    %143 = vmatmul.mubr.f32.gmra.mxu0 %v67
    %v144 = vpop.f32.mrf.mxu0
    %v145 = vadd.f32 %v63, %v144
    %v146 = vpop.f32.mrf.mxu0
    %147 = vmatprep.mubr.f32.mxu0 0.0
    %148 = vmatmul.mubr.f32.gmra.mxu0 %v70
    %v149 = vpop.f32.mrf.mxu0
    %v150 = vadd.f32 %v63, %v149
    %v151 = vpop.f32.mrf.mxu0
    %152 = vmatprep.mubr.f32.mxu0 0.0
    %153 = vmatmul.mubr.f32.gmra.mxu0 %v73
    %v154 = vpop.f32.mrf.mxu0
    %v155 = vadd.f32 %v63, %v154
    %v156 = vpop.f32.mrf.mxu0
    %157 = vmatprep.mubr.f32.mxu0 0.0
    %158 = vmatmul.mubr.f32.gmra.mxu0 %v76
    %v159 = vpop.f32.mrf.mxu0
    %v160 = vadd.f32 %v63, %v159
    %v161 = vpop.f32.mrf.mxu0
    %162 = vdwg.mxu0
    %v163 = vmax.f32 %v145, 0.0
    %v164 = vmax.f32 %v150, 0.0
    %v165 = vmax.f32 %v155, 0.0
    %v166 = vmax.f32 %v160, 0.0
    %v167 = vld [vmem:[%s3] sm:$0x1]
    %v168 = vld [vmem:[#allocation2] sm:$0x1]
    %170 = vset.pattern.permute.xlu0 0
    %171 = vperm.xlu0 %170, %v168
    %v172 = vpop.permute.xlu0 %171
    %v174 = vlaneseq
    %v175 = vshrl.u32 %v174, 7
    %v176 = vsub.s32 0, %v175
    %v177 = vrot.slane %v172, %v176
    %v179 = vsel %vm65, %v167, 0
    %v182 = vsel %vm65, %v163, 0
    %v185 = vsel %vm65, %v164, 0
    %v188 = vsel %vm65, %v165, 0
    %v191 = vsel %vm65, %v166, 0
    %193 = vmatprep.subr.mxu0 0.0
    %194 = vmatpush1.xpose.msra.mxu0 0.0
    %195 = vmatprep.subr.mxu0 0.0
    %196 = vmatpush1.xpose.msra.mxu0 0.0
    %197 = vmatprep.subr.mxu0 0.0
    %198 = vmatpush1.xpose.msra.mxu0 0.0
    %199 = vmatprep.subr.mxu0 0.0
    %200 = vmatpush1.xpose.msra.mxu0 0.0
    %201 = vmatprep.subr.mxu0 0.0
    %202 = vmatpush1.xpose.msra.mxu0 0.0
    %203 = vmatprep.subr.mxu0 0.0
    %204 = vmatpush1.xpose.msra.mxu0 0.0
    %205 = vmatprep.subr.mxu0 0.0
    %206 = vmatpush1.xpose.msra.mxu0 0.0
    %207 = vmatprep.subr.mxu0 0.0
    %208 = vmatpush1.xpose.msra.mxu0 0.0
    %209 = vmatprep.subr.mxu0 0.0
    %210 = vmatpush1.xpose.msra.mxu0 0.0
    %211 = vmatprep.subr.mxu0 0.0
    %212 = vmatpush1.xpose.msra.mxu0 0.0
    %213 = vmatprep.subr.mxu0 0.0
    %214 = vmatpush1.xpose.msra.mxu0 0.0
    %215 = vmatprep.subr.mxu0 0.0
    %216 = vmatpush1.xpose.msra.mxu0 0.0
    %217 = vmatprep.subr.mxu0 0.0
    %218 = vmatpush1.xpose.msra.mxu0 %v191
    %219 = vmatprep.subr.mxu0 0.0
    %220 = vmatpush1.xpose.msra.mxu0 %v188
    %221 = vmatprep.subr.mxu0 0.0
    %222 = vmatpush1.xpose.msra.mxu0 %v185
    %223 = vmatprep.subr.mxu0 0.0
    %224 = vmatpush1.xpose.msra.mxu0 %v182
    %225 = vmatprep.subr.mxu0 0.0
    %226 = vmatpush2.xpose.msra.mxu0 0.0
    %227 = vmatprep.subr.mxu0 0.0
    %228 = vmatpush2.xpose.msra.mxu0 0.0
    %229 = vmatprep.subr.mxu0 0.0
    %230 = vmatpush2.xpose.msra.mxu0 0.0
    %231 = vmatprep.subr.mxu0 0.0
    %232 = vmatpush2.xpose.msra.mxu0 0.0
    %233 = vmatprep.subr.mxu0 0.0
    %234 = vmatpush2.xpose.msra.mxu0 0.0
    %235 = vmatprep.subr.mxu0 0.0
    %236 = vmatpush2.xpose.msra.mxu0 0.0
    %237 = vmatprep.subr.mxu0 0.0
    %238 = vmatpush2.xpose.msra.mxu0 0.0
    %239 = vmatprep.subr.mxu0 0.0
    %240 = vmatpush2.xpose.msra.mxu0 0.0
    %241 = vmatprep.subr.mxu0 0.0
    %242 = vmatpush2.xpose.msra.mxu0 0.0
    %243 = vmatprep.subr.mxu0 0.0
    %244 = vmatpush2.xpose.msra.mxu0 0.0
    %245 = vmatprep.subr.mxu0 0.0
    %246 = vmatpush2.xpose.msra.mxu0 0.0
    %247 = vmatprep.subr.mxu0 0.0
    %248 = vmatpush2.xpose.msra.mxu0 0.0
    %249 = vmatprep.subr.mxu0 0.0
    %250 = vmatpush2.xpose.msra.mxu0 0.0
    %251 = vmatprep.subr.mxu0 0.0
    %252 = vmatpush2.xpose.msra.mxu0 0.0
    %253 = vmatprep.subr.mxu0 0.0
    %254 = vmatpush2.xpose.msra.mxu0 0.0
    %255 = vmatprep.subr.mxu0 0.0
    %256 = vmatpush2.xpose.msra.mxu0 0.0
    %257 = vmatprep.mubr.f32.mxu0 0.0
    %258 = vmatmul.mubr.f32.gmra.mxu0 %v179
    %v259 = vpop.f32.mrf.mxu0
    %v260 = vadd.f32 %v177, %v259
    %v261 = vpop.f32.mrf.mxu0
    %262 = vdwg.mxu0
    %vm263 = vcmask 253952
    %264 = vst.msk [vmem:[%s5] sm:$0x1] %vm263, %v260
    // Predicated region
    $region30: #{graph_classification_forward.1} parent=1 // pred_check
      _
    $region31: #{graph_classification_forward.1} parent=1 // pred_check_branch
      %266 = sbr.rel (0) target = $region33
    $region32: #{graph_classification_forward.1} parent=1 // pred_region
      _
    $region33: #{graph_classification_forward.1} parent=1 // pred_fallthru
      _
    // Predicated region
    $region34: #{graph_classification_forward.1} parent=1 // pred_check
      _
    $region35: #{graph_classification_forward.1} parent=1 // pred_check_branch
      %268 = sbr.rel (0) target = $region37
    $region36: #{graph_classification_forward.1} parent=1 // pred_region
      _
    $region37: #{graph_classification_forward.1} parent=1 // pred_fallthru
      _
    %269 = vsyncpa [#allocation4], 1
    %270 = vsyncpa [#allocation6], 1

</llo_original>
